<compile_context>
chip_gen: v6e
topology: v6e:2x2x1
jax: 0.10.0
libtpu: 0.0.40
codegen_flags: <defaults>
</compile_context>

<pallas_src>
import math

import jax
import jax.numpy as jnp
from jax.experimental import pallas as pl
from jax.experimental.pallas import tpu as pltpu


def _round_up(n, m):
    return -(-n // m) * m


def _deep_gmm_kernel(x_ref, w1_ref, b1_ref, w2_ref, b2_ref, rhs_ref, bias_ref, out_ref):
    cdt = w1_ref.dtype  # compute dtype of the matmul operands (f32 or bf16)

    # ---- extractor: Linear -> ReLU -> Linear (MXU, f32 accumulate) ----
    h = jnp.maximum(
        jnp.dot(x_ref[...], w1_ref[...], preferred_element_type=jnp.float32)
        + b1_ref[...], 0.0)
    f = (jnp.dot(h.astype(cdt), w2_ref[...], preferred_element_type=jnp.float32)
         + b2_ref[...])                                                    # [TB, D] f32

    # ---- all mixtures/components in ONE wide matmul ----
    #   out[b, m*K+k] = -0.5*w[m,k]*( f2 . iv[m,k] - 2 f . mu*iv[m,k] + const[m,k] )
    # softmax weights, -0.5 and the constant are pre-folded into rhs / bias.
    f_cat = jnp.concatenate([f * f, f], axis=-1).astype(cdt)               # [TB, 2D]
    out_ref[...] = (jnp.dot(f_cat, rhs_ref[...], preferred_element_type=jnp.float32)
                    + bias_ref[...])


def init_params(key, din, hidden, dfeat, n_mix, n_comp):
    ks = jax.random.split(key, 5)
    return dict(
        w1=jax.random.normal(ks[0], (din, hidden), jnp.float32) * 0.1,
        b1=jnp.zeros((1, hidden), jnp.float32),
        w2=jax.random.normal(ks[1], (hidden, dfeat), jnp.float32) * 0.1,
        b2=jnp.zeros((1, dfeat), jnp.float32),
        means=jax.random.normal(ks[2], (n_mix, n_comp, dfeat), jnp.float32),
        # diagonal covariance branch: positive variances
        variances=0.5 + jax.random.uniform(ks[3], (n_mix, n_comp, dfeat), jnp.float32),
        logw=jax.random.normal(ks[4], (n_mix, n_comp), jnp.float32),
    )


def deep_gmm_forward(x, p, *, block_b=2048, use_bf16=False):
    """Pallas forward.  Returns [B, M, K] — same as DeepGMM.forward in torch."""
    b, din = x.shape
    hid = p["w1"].shape[1]
    n_mix, n_comp, dfeat = p["means"].shape
    mk = n_mix * n_comp

    # ---- parameter-only prep (tiny XLA glue, once per call) ----
    inv_var = 1.0 / p["variances"]                               # [M, K, D]
    wnorm = jax.nn.softmax(p["logw"], axis=-1)                   # [M, K] softmax over comps
    const = (jnp.sum(p["means"] ** 2 * inv_var, axis=-1)
             + jnp.sum(jnp.log(p["variances"]), axis=-1)
             + dfeat * math.log(2.0 * math.pi))                  # [M, K]
    rhs_quad = ((-0.5 * wnorm)[..., None] * inv_var).reshape(mk, dfeat).T          # [D, M*K]
    rhs_lin = (wnorm[..., None] * p["means"] * inv_var).reshape(mk, dfeat).T       # [D, M*K]
    rhs_cat = jnp.concatenate([rhs_quad, rhs_lin], axis=0)                         # [2D, M*K]
    bias = (-0.5 * wnorm * const).reshape(1, mk)                                   # [1, M*K]

    # lane-dense output: pad the component axis to 128 only when M*K is big enough for
    # masked vst to hurt more than the extra writeback (gated; toy M*K=12 stays as-is).
    if mk >= 64 and mk % 128 != 0:
        mk_pad = _round_up(mk, 128)
        rhs_cat = jnp.pad(rhs_cat, ((0, 0), (0, mk_pad - mk)))
        bias = jnp.pad(bias, ((0, 0), (0, mk_pad - mk)))
    else:
        mk_pad = mk

    # matmul operand dtype (bf16 keeps f32 accumulation via preferred_element_type)
    cdt = jnp.bfloat16 if use_bf16 else jnp.float32
    xin = x.astype(cdt)
    w1 = p["w1"].astype(cdt)
    w2 = p["w2"].astype(cdt)
    rhs_cat = rhs_cat.astype(cdt)
    b1 = p["b1"].astype(jnp.float32)
    b2 = p["b2"].astype(jnp.float32)
    bias = bias.astype(jnp.float32)

    # ---- batch tiling: >= 2 grid steps when possible (v7x megacore), ragged last block ----
    tb = min(block_b, _round_up(pl.cdiv(b, 2), 8))
    if tb > b:
        tb = b                                                   # tiny batch: one full block
    grid = (pl.cdiv(b, tb),)

    def const_spec(shape):
        # grid-invariant parameter: constant index_map + single-buffered (no re-DMA)
        return pl.BlockSpec(shape, lambda i: (0,) * len(shape),
                            pipeline_mode=pl.Buffered(1))

    # ---- VMEM budget from (8,128)-padded buffer sizes; headroom; <64 MiB (v7x) ----
    cb = 2 if use_bf16 else 4

    def pbytes(shape, nbytes):
        s = (1,) * max(0, 2 - len(shape)) + tuple(shape)
        n = _round_up(s[-2], 8) * _round_up(s[-1], 128)
        for d in s[:-2]:
            n *= d
        return n * nbytes

    vmem_est = (2 * pbytes((tb, din), cb) + 2 * pbytes((tb, mk_pad), 4)   # pipelined tiles (x2)
                + pbytes((din, hid), cb) + pbytes((1, hid), 4)            # resident params (x1)
                + pbytes((hid, dfeat), cb) + pbytes((1, dfeat), 4)
                + pbytes((2 * dfeat, mk_pad), cb) + pbytes((1, mk_pad), 4)
                + pbytes((tb, hid), 4) + 3 * pbytes((tb, 2 * dfeat), 4))  # h, f, f*f, f_cat
    vmem_limit = int(min(vmem_est + (8 << 20), 48 << 20))

    cost = pl.CostEstimate(
        flops=2 * b * (din * hid + hid * dfeat + 2 * dfeat * mk_pad),
        transcendentals=0,
        bytes_accessed=(b * din * cb + b * mk_pad * 4
                        + (din * hid + hid * dfeat + 2 * dfeat * mk_pad) * cb
                        + (hid + dfeat + mk_pad) * 4),
    )

    out_flat = pl.pallas_call(
        _deep_gmm_kernel,
        out_shape=jax.ShapeDtypeStruct((b, mk_pad), jnp.float32),
        grid=grid,
        in_specs=[
            pl.BlockSpec((tb, din), lambda i: (i, 0)),           # x tile (ragged last block OK)
            const_spec(w1.shape), const_spec(b1.shape),
            const_spec(w2.shape), const_spec(b2.shape),
            const_spec(rhs_cat.shape), const_spec(bias.shape),
        ],
        out_specs=pl.BlockSpec((tb, mk_pad), lambda i: (i, 0)),  # batch-major [TB, M*K]
        compiler_params=pltpu.CompilerParams(
            dimension_semantics=("parallel",),                   # shard batch across v7x's 2 TCs
            vmem_limit_bytes=vmem_limit),
        cost_estimate=cost,
    )(xin, w1, b1, w2, b2, rhs_cat, bias)

    return out_flat[:, :mk].reshape(b, n_mix, n_comp)            # free reshape -> [B, M, K]


def ref_forward(x, p):
    """Pure-JAX reference mirroring the PyTorch semantics (diagonal-covariance branch)."""
    h = jnp.maximum(x @ p["w1"] + p["b1"], 0.0)
    f = h @ p["w2"] + p["b2"]
    _, _, dfeat = p["means"].shape
    diff = f[:, None, None, :] - p["means"][None]                # [B, M, K, D]
    quad = jnp.sum(diff * diff / p["variances"][None], axis=-1)  # [B, M, K]
    logdet = jnp.sum(jnp.log(p["variances"]), axis=-1)           # [M, K]
    logprob = -0.5 * (quad + logdet[None] + dfeat * math.log(2.0 * math.pi))
    wnorm = jax.nn.softmax(p["logw"], axis=-1)                   # [M, K]
    return wnorm[None] * logprob                                 # [B, M, K]


# TODO(synk): full-covariance branch (MultivariateNormal with scale_tril=tril(cov)) not
#             implemented — only the diagonal-covariance branch of GaussianComponent.
# TODO(synk): GaussianComponent.self.max running-statistic side effect and clamp_cov
#             (training-time utilities) intentionally omitted from the forward kernel.

if __name__ == "__main__":
    DIN, HID, DFEAT, M, K = 32, 32, 16, 3, 4
    key = jax.random.PRNGKey(0)
    kx, kp, kx2 = jax.random.split(key, 3)
    params = init_params(kp, DIN, HID, DFEAT, M, K)

    # case 1: f32, batch splits into 2 grid steps (both v7x TensorCores busy)
    B = 64
    x = jax.random.normal(kx, (B, DIN), jnp.float32)
    out = jax.block_until_ready(deep_gmm_forward(x, params))
    ref = ref_forward(x, params)
    assert out.shape == (B, M, K), out.shape
    assert jnp.allclose(out, ref, atol=1e-3, rtol=1e-4), float(jnp.max(jnp.abs(out - ref)))

    # case 2: ragged last block (B % tb != 0) — no pad / no output-slice HBM passes
    B2 = 70
    x2 = jax.random.normal(kx2, (B2, DIN), jnp.float32)
    out2 = jax.block_until_ready(deep_gmm_forward(x2, params, block_b=32))
    ref2 = ref_forward(x2, params)
    assert out2.shape == (B2, M, K), out2.shape
    assert jnp.allclose(out2, ref2, atol=1e-3, rtol=1e-4), float(jnp.max(jnp.abs(out2 - ref2)))

    # case 3: bf16 matmul operands (v5e/v6e/v7x MXU fast path), f32 accumulation
    out3 = jax.block_until_ready(deep_gmm_forward(x, params, use_bf16=True))
    assert out3.shape == (B, M, K), out3.shape
    assert jnp.allclose(out3, ref, atol=5e-2, rtol=2e-2), float(jnp.max(jnp.abs(out3 - ref)))

    print("KERNEL_OK")
</pallas_src>

<mosaic_0001>
module attributes {stable_mosaic.version = 11 : i64} {
  func.func @_deep_gmm_kernel(%arg0: i32, %arg1: memref<32x32xf32, #tpu.memory_space<vmem>>, %arg2: memref<32x32xf32, #tpu.memory_space<vmem>>, %arg3: memref<1x32xf32, #tpu.memory_space<vmem>>, %arg4: memref<32x16xf32, #tpu.memory_space<vmem>>, %arg5: memref<1x16xf32, #tpu.memory_space<vmem>>, %arg6: memref<32x12xf32, #tpu.memory_space<vmem>>, %arg7: memref<1x12xf32, #tpu.memory_space<vmem>>, %arg8: memref<32x12xf32, #tpu.memory_space<vmem>>) attributes {dimension_semantics = [#tpu.dimension_semantics<parallel>], iteration_bounds = array<i64: 2>, scalar_prefetch = 0 : i64, scratch_operands = 0 : i64, tpu.core_type = #tpu.core_type<tc>, window_params = [{transform_indices = @transform_0, window_bounds = array<i64: 32, 32>}, {pipeline_mode = #tpu.pipeline_mode<synchronous>, transform_indices = @transform_1, window_bounds = array<i64: 32, 32>}, {pipeline_mode = #tpu.pipeline_mode<synchronous>, transform_indices = @transform_2, window_bounds = array<i64: 1, 32>}, {pipeline_mode = #tpu.pipeline_mode<synchronous>, transform_indices = @transform_3, window_bounds = array<i64: 32, 16>}, {pipeline_mode = #tpu.pipeline_mode<synchronous>, transform_indices = @transform_4, window_bounds = array<i64: 1, 16>}, {pipeline_mode = #tpu.pipeline_mode<synchronous>, transform_indices = @transform_5, window_bounds = array<i64: 32, 12>}, {pipeline_mode = #tpu.pipeline_mode<synchronous>, transform_indices = @transform_6, window_bounds = array<i64: 1, 12>}, {transform_indices = @transform_7, window_bounds = array<i64: 32, 12>}]} {
    %c0 = arith.constant 0 : index
    %c0_0 = arith.constant 0 : index
    %0 = vector.load %arg1[%c0, %c0_0] : memref<32x32xf32, #tpu.memory_space<vmem>>, vector<32x32xf32>
    %c0_1 = arith.constant 0 : index
    %c0_2 = arith.constant 0 : index
    %1 = vector.load %arg2[%c0_1, %c0_2] : memref<32x32xf32, #tpu.memory_space<vmem>>, vector<32x32xf32>
    %cst = arith.constant dense<0.000000e+00> : vector<32x32xf32>
    %2 = tpu.matmul %0, %1, %cst {dimension_numbers = #tpu.dot_dimension_numbers<[1], [0], [0], [1], [0, 0, 1, 1], [], []>} : vector<32x32xf32>, vector<32x32xf32>, vector<32x32xf32> -> vector<32x32xf32>
    %c0_3 = arith.constant 0 : index
    %c0_4 = arith.constant 0 : index
    %3 = vector.load %arg3[%c0_3, %c0_4] : memref<1x32xf32, #tpu.memory_space<vmem>>, vector<1x32xf32>
    %4 = vector.broadcast %3 : vector<1x32xf32> to vector<32x32xf32>
    %5 = arith.addf %2, %4 : vector<32x32xf32>
    %cst_5 = arith.constant 0.000000e+00 : f32
    %6 = vector.broadcast %cst_5 : f32 to vector<32x32xf32>
    %7 = arith.maximumf %5, %6 : vector<32x32xf32>
    %c0_6 = arith.constant 0 : index
    %c0_7 = arith.constant 0 : index
    %8 = vector.load %arg4[%c0_6, %c0_7] : memref<32x16xf32, #tpu.memory_space<vmem>>, vector<32x16xf32>
    %cst_8 = arith.constant dense<0.000000e+00> : vector<32x16xf32>
    %9 = tpu.matmul %7, %8, %cst_8 {dimension_numbers = #tpu.dot_dimension_numbers<[1], [0], [0], [1], [0, 0, 1, 1], [], []>} : vector<32x32xf32>, vector<32x16xf32>, vector<32x16xf32> -> vector<32x16xf32>
    %c0_9 = arith.constant 0 : index
    %c0_10 = arith.constant 0 : index
    %10 = vector.load %arg5[%c0_9, %c0_10] : memref<1x16xf32, #tpu.memory_space<vmem>>, vector<1x16xf32>
    %11 = vector.broadcast %10 : vector<1x16xf32> to vector<32x16xf32>
    %12 = arith.addf %9, %11 : vector<32x16xf32>
    %13 = arith.mulf %12, %12 : vector<32x16xf32>
    %14 = tpu.concatenate %13, %12 in 1 : vector<32x16xf32>, vector<32x16xf32> -> vector<32x32xf32>
    %c0_11 = arith.constant 0 : index
    %c0_12 = arith.constant 0 : index
    %15 = vector.load %arg6[%c0_11, %c0_12] : memref<32x12xf32, #tpu.memory_space<vmem>>, vector<32x12xf32>
    %cst_13 = arith.constant dense<0.000000e+00> : vector<32x12xf32>
    %16 = tpu.matmul %14, %15, %cst_13 {dimension_numbers = #tpu.dot_dimension_numbers<[1], [0], [0], [1], [0, 0, 1, 1], [], []>} : vector<32x32xf32>, vector<32x12xf32>, vector<32x12xf32> -> vector<32x12xf32>
    %c0_14 = arith.constant 0 : index
    %c0_15 = arith.constant 0 : index
    %17 = vector.load %arg7[%c0_14, %c0_15] : memref<1x12xf32, #tpu.memory_space<vmem>>, vector<1x12xf32>
    %18 = vector.broadcast %17 : vector<1x12xf32> to vector<32x12xf32>
    %19 = arith.addf %16, %18 : vector<32x12xf32>
    %c0_16 = arith.constant 0 : index
    %c0_17 = arith.constant 0 : index
    %20 = vector.load %arg8[%c0_16, %c0_17] : memref<32x12xf32, #tpu.memory_space<vmem>>, vector<32x12xf32>
    tpu.vector_store %arg8[%c0_16, %c0_17], %19 {strides = array<i32>} : memref<32x12xf32, #tpu.memory_space<vmem>>, vector<32x12xf32>,
    return
  }
  func.func @transform_0(%arg0: i32) -> (i32, i32) {
    %c0_i32 = arith.constant 0 : i32
    %c0_i32_0 = arith.constant 0 : i32
    return %arg0, %c0_i32 : i32, i32
  }
  func.func @transform_1(%arg0: i32) -> (i32, i32) {
    %c0_i32 = arith.constant 0 : i32
    %c0_i32_0 = arith.constant 0 : i32
    %c0_i32_1 = arith.constant 0 : i32
    return %c0_i32, %c0_i32_0 : i32, i32
  }
  func.func @transform_2(%arg0: i32) -> (i32, i32) {
    %c0_i32 = arith.constant 0 : i32
    %c0_i32_0 = arith.constant 0 : i32
    %c0_i32_1 = arith.constant 0 : i32
    return %c0_i32, %c0_i32_0 : i32, i32
  }
  func.func @transform_3(%arg0: i32) -> (i32, i32) {
    %c0_i32 = arith.constant 0 : i32
    %c0_i32_0 = arith.constant 0 : i32
    %c0_i32_1 = arith.constant 0 : i32
    return %c0_i32, %c0_i32_0 : i32, i32
  }
  func.func @transform_4(%arg0: i32) -> (i32, i32) {
    %c0_i32 = arith.constant 0 : i32
    %c0_i32_0 = arith.constant 0 : i32
    %c0_i32_1 = arith.constant 0 : i32
    return %c0_i32, %c0_i32_0 : i32, i32
  }
  func.func @transform_5(%arg0: i32) -> (i32, i32) {
    %c0_i32 = arith.constant 0 : i32
    %c0_i32_0 = arith.constant 0 : i32
    %c0_i32_1 = arith.constant 0 : i32
    return %c0_i32, %c0_i32_0 : i32, i32
  }
  func.func @transform_6(%arg0: i32) -> (i32, i32) {
    %c0_i32 = arith.constant 0 : i32
    %c0_i32_0 = arith.constant 0 : i32
    %c0_i32_1 = arith.constant 0 : i32
    return %c0_i32, %c0_i32_0 : i32, i32
  }
  func.func @transform_7(%arg0: i32) -> (i32, i32) {
    %c0_i32 = arith.constant 0 : i32
    %c0_i32_0 = arith.constant 0 : i32
    return %arg0, %c0_i32 : i32, i32
  }
}

</mosaic_0001>

<llo_original>
// kernel: tpu_custom_call.1
$region0: #{tpu_custom_call.1}
  #allocation0 [shape = 'u32[]', space=smem, size = 0x4, offset = 0x4, fixed_abs, tag = 'smem constant byte address 0x4 - core index']
  #allocation1 [shape = 'u32[144,128]{1,0:T(1,128)}', space=vmem, size = 0x12000, scoped, tag = 'internal scratch']
  %s0 = inlined_call_operand.vmem [shape: f32[64,32], index: 0, kind: input, shape index: {}]
  %s1 = inlined_call_operand.vmem [shape: f32[32,32], index: 1, kind: input, shape index: {}]
  %s2 = inlined_call_operand.vmem [shape: f32[1,32], index: 2, kind: input, shape index: {}]
  %s3 = inlined_call_operand.vmem [shape: f32[32,16], index: 3, kind: input, shape index: {}]
  %s4 = inlined_call_operand.vmem [shape: f32[1,16], index: 4, kind: input, shape index: {}]
  %s5 = inlined_call_operand.vmem [shape: f32[32,12], index: 5, kind: input, shape index: {}]
  %s6 = inlined_call_operand.vmem [shape: f32[1,12], index: 6, kind: input, shape index: {}]
  %s7 = inlined_call_operand.vmem [shape: f32[64,12], index: 7, kind: output, shape index: {}]
  %s8 = sld [smem:[#allocation0]]
  $region61: #{tpu_custom_call.1} parent=0
    _
  %s10 = ssub.s32 1, %s8
  %s11 = scalar_select 0, %s10, %s8
  loop: start=0, step=1, limit=4
  $region2: #{tpu_custom_call.1} parent=0 // loop_pre_header
    _
  $region3: #{tpu_custom_call.1} parent=0 // loop_header
    %s13 = sphi 0, %s17
    %p14 = scmp.ge.s32.totalorder %s13, 4
    %s23 = sphi 0, %s25
    %s26 = sphi 0, %s23
    %s27 = sphi 0, %s26
    %s43 = sphi 0, %s27
    %s47 = sphi 0, %s47
    %s49 = sphi 0, %s47
    %s50 = sphi 0, %s49
    %s64 = sphi 0, %s50
    %s68 = sphi 0, %s68
    %s70 = sphi 0, %s68
    %s71 = sphi 0, %s70
    %s85 = sphi 0, %s71
    %s89 = sphi 0, %s89
    %s91 = sphi 0, %s89
    %s92 = sphi 0, %s91
    %s106 = sphi 0, %s92
    %s110 = sphi 0, %s110
    %s112 = sphi 0, %s110
    %s113 = sphi 0, %s112
    %s127 = sphi 0, %s113
    %s131 = sphi 0, %s131
    %s133 = sphi 0, %s131
    %s134 = sphi 0, %s133
    %s148 = sphi 0, %s134
    %s152 = sphi 0, %s152
    %s154 = sphi 0, %s152
    %s155 = sphi 0, %s154
    %s169 = sphi 0, %s155
    %s175 = sphi 0, %s177
    %s178 = sphi 0, %s175
    %s179 = sphi 0, %s178
    %s195 = sphi 0, %s179
  $region4: #{tpu_custom_call.1} parent=0 // loop_header_branch
    %16 = sbr.rel (%p14) target = $region8
  $region5: #{tpu_custom_call.1} parent=0 // loop_body
    %s18 = ssub.s32 %s13, 1
    %s19 = ssub.s32 %s13, 2
    %s20 = sadd.s32 %s13, 1
    %s21 = ssub.s32 %s13, %s20
    %p22 = scmp.eq.s32.totalorder %s21, 0
    %s24 = sadd.s32 %s23, 1
    %s25 = scalar_select %p22, %s23, %s24
    %p28 = pneg %p22
    %p29 = scmp.eq.s32.totalorder %s13, 1
    %p30 = por %p28, %p29
    %p31 = scmp.ne.s32.totalorder %s23, %s26
    %p32 = scmp.eq.s32.totalorder %s13, 0
    %p33 = por %p31, %p32
    %p34 = scmp.ne.s32.totalorder %s23, %s26
    %p35 = scmp.eq.s32.totalorder %s18, 1
    %p36 = por %p34, %p35
    %p37 = scmp.ne.s32.totalorder %s26, %s27
    %p38 = scmp.eq.s32.totalorder %s18, 0
    %p39 = por %p37, %p38
    %p40 = scmp.ne.s32.totalorder %s26, %s27
    %p41 = scmp.eq.s32.totalorder %s19, 1
    %p42 = por %p40, %p41
    %p44 = scmp.ne.s32.totalorder %s27, %s43
    %p45 = scmp.eq.s32.totalorder %s19, 0
    %p46 = por %p44, %p45
    %s48 = sadd.s32 %s47, 1
    %p51 = scmp.eq.s32.totalorder %s13, 1
    %p52 = scmp.ne.s32.totalorder %s47, %s49
    %p53 = scmp.eq.s32.totalorder %s13, 0
    %p54 = por %p52, %p53
    %p55 = scmp.ne.s32.totalorder %s47, %s49
    %p56 = scmp.eq.s32.totalorder %s18, 1
    %p57 = por %p55, %p56
    %p58 = scmp.ne.s32.totalorder %s49, %s50
    %p59 = scmp.eq.s32.totalorder %s18, 0
    %p60 = por %p58, %p59
    %p61 = scmp.ne.s32.totalorder %s49, %s50
    %p62 = scmp.eq.s32.totalorder %s19, 1
    %p63 = por %p61, %p62
    %p65 = scmp.ne.s32.totalorder %s50, %s64
    %p66 = scmp.eq.s32.totalorder %s19, 0
    %p67 = por %p65, %p66
    %s69 = sadd.s32 %s68, 1
    %p72 = scmp.eq.s32.totalorder %s13, 1
    %p73 = scmp.ne.s32.totalorder %s68, %s70
    %p74 = scmp.eq.s32.totalorder %s13, 0
    %p75 = por %p73, %p74
    %p76 = scmp.ne.s32.totalorder %s68, %s70
    %p77 = scmp.eq.s32.totalorder %s18, 1
    %p78 = por %p76, %p77
    %p79 = scmp.ne.s32.totalorder %s70, %s71
    %p80 = scmp.eq.s32.totalorder %s18, 0
    %p81 = por %p79, %p80
    %p82 = scmp.ne.s32.totalorder %s70, %s71
    %p83 = scmp.eq.s32.totalorder %s19, 1
    %p84 = por %p82, %p83
    %p86 = scmp.ne.s32.totalorder %s71, %s85
    %p87 = scmp.eq.s32.totalorder %s19, 0
    %p88 = por %p86, %p87
    %s90 = sadd.s32 %s89, 1
    %p93 = scmp.eq.s32.totalorder %s13, 1
    %p94 = scmp.ne.s32.totalorder %s89, %s91
    %p95 = scmp.eq.s32.totalorder %s13, 0
    %p96 = por %p94, %p95
    %p97 = scmp.ne.s32.totalorder %s89, %s91
    %p98 = scmp.eq.s32.totalorder %s18, 1
    %p99 = por %p97, %p98
    %p100 = scmp.ne.s32.totalorder %s91, %s92
    %p101 = scmp.eq.s32.totalorder %s18, 0
    %p102 = por %p100, %p101
    %p103 = scmp.ne.s32.totalorder %s91, %s92
    %p104 = scmp.eq.s32.totalorder %s19, 1
    %p105 = por %p103, %p104
    %p107 = scmp.ne.s32.totalorder %s92, %s106
    %p108 = scmp.eq.s32.totalorder %s19, 0
    %p109 = por %p107, %p108
    %s111 = sadd.s32 %s110, 1
    %p114 = scmp.eq.s32.totalorder %s13, 1
    %p115 = scmp.ne.s32.totalorder %s110, %s112
    %p116 = scmp.eq.s32.totalorder %s13, 0
    %p117 = por %p115, %p116
    %p118 = scmp.ne.s32.totalorder %s110, %s112
    %p119 = scmp.eq.s32.totalorder %s18, 1
    %p120 = por %p118, %p119
    %p121 = scmp.ne.s32.totalorder %s112, %s113
    %p122 = scmp.eq.s32.totalorder %s18, 0
    %p123 = por %p121, %p122
    %p124 = scmp.ne.s32.totalorder %s112, %s113
    %p125 = scmp.eq.s32.totalorder %s19, 1
    %p126 = por %p124, %p125
    %p128 = scmp.ne.s32.totalorder %s113, %s127
    %p129 = scmp.eq.s32.totalorder %s19, 0
    %p130 = por %p128, %p129
    %s132 = sadd.s32 %s131, 1
    %p135 = scmp.eq.s32.totalorder %s13, 1
    %p136 = scmp.ne.s32.totalorder %s131, %s133
    %p137 = scmp.eq.s32.totalorder %s13, 0
    %p138 = por %p136, %p137
    %p139 = scmp.ne.s32.totalorder %s131, %s133
    %p140 = scmp.eq.s32.totalorder %s18, 1
    %p141 = por %p139, %p140
    %p142 = scmp.ne.s32.totalorder %s133, %s134
    %p143 = scmp.eq.s32.totalorder %s18, 0
    %p144 = por %p142, %p143
    %p145 = scmp.ne.s32.totalorder %s133, %s134
    %p146 = scmp.eq.s32.totalorder %s19, 1
    %p147 = por %p145, %p146
    %p149 = scmp.ne.s32.totalorder %s134, %s148
    %p150 = scmp.eq.s32.totalorder %s19, 0
    %p151 = por %p149, %p150
    %s153 = sadd.s32 %s152, 1
    %p156 = scmp.eq.s32.totalorder %s13, 1
    %p157 = scmp.ne.s32.totalorder %s152, %s154
    %p158 = scmp.eq.s32.totalorder %s13, 0
    %p159 = por %p157, %p158
    %p160 = scmp.ne.s32.totalorder %s152, %s154
    %p161 = scmp.eq.s32.totalorder %s18, 1
    %p162 = por %p160, %p161
    %p163 = scmp.ne.s32.totalorder %s154, %s155
    %p164 = scmp.eq.s32.totalorder %s18, 0
    %p165 = por %p163, %p164
    %p166 = scmp.ne.s32.totalorder %s154, %s155
    %p167 = scmp.eq.s32.totalorder %s19, 1
    %p168 = por %p166, %p167
    %p170 = scmp.ne.s32.totalorder %s155, %s169
    %p171 = scmp.eq.s32.totalorder %s19, 0
    %p172 = por %p170, %p171
    %s173 = ssub.s32 %s13, %s20
    %p174 = scmp.eq.s32.totalorder %s173, 0
    %s176 = sadd.s32 %s175, 1
    %s177 = scalar_select %p174, %s175, %s176
    %p180 = pneg %p174
    %p181 = scmp.eq.s32.totalorder %s13, 1
    %p182 = por %p180, %p181
    %p183 = scmp.ne.s32.totalorder %s175, %s178
    %p184 = scmp.eq.s32.totalorder %s13, 0
    %p185 = por %p183, %p184
    %p186 = scmp.ne.s32.totalorder %s175, %s178
    %p187 = scmp.eq.s32.totalorder %s18, 1
    %p188 = por %p186, %p187
    %p189 = scmp.ne.s32.totalorder %s178, %s179
    %p190 = scmp.eq.s32.totalorder %s18, 0
    %p191 = por %p189, %p190
    %p192 = scmp.ne.s32.totalorder %s178, %s179
    %p193 = scmp.eq.s32.totalorder %s19, 1
    %p194 = por %p192, %p193
    %p196 = scmp.ne.s32.totalorder %s179, %s195
    %p197 = scmp.eq.s32.totalorder %s19, 0
    %p198 = por %p196, %p197
    %p199 = scmp.le.s32.totalorder 1, %s13
    %p200 = scmp.lt.s32.totalorder %s13, 3
    %p201 = pnand %p199, %p200
    %p202 = pneg %p201
    // Predicated region
    $region9: #{tpu_custom_call.1} parent=5 // pred_check
      _
    $region10: #{tpu_custom_call.1} parent=5 // pred_check_branch
      %204 = sbr.rel (%p201) target = $region12
    $region11: #{tpu_custom_call.1} parent=5 // pred_region
      %s205 = ssub.s32 %s13, 1
      // Predicated region
      $region13: #{tpu_custom_call.1} parent=11 // pred_check
        %p206 = pneg %p60
      $region14: #{tpu_custom_call.1} parent=11 // pred_check_branch
        %208 = sbr.rel (%p206) target = $region16
      $region15: #{tpu_custom_call.1} parent=11 // pred_region
        _
      $region16: #{tpu_custom_call.1} parent=11 // pred_fallthru
        _
      // Predicated region
      $region17: #{tpu_custom_call.1} parent=11 // pred_check
        %p209 = pneg %p81
      $region18: #{tpu_custom_call.1} parent=11 // pred_check_branch
        %211 = sbr.rel (%p209) target = $region20
      $region19: #{tpu_custom_call.1} parent=11 // pred_region
        _
      $region20: #{tpu_custom_call.1} parent=11 // pred_fallthru
        _
      // Predicated region
      $region21: #{tpu_custom_call.1} parent=11 // pred_check
        %p212 = pneg %p102
      $region22: #{tpu_custom_call.1} parent=11 // pred_check_branch
        %214 = sbr.rel (%p212) target = $region24
      $region23: #{tpu_custom_call.1} parent=11 // pred_region
        _
      $region24: #{tpu_custom_call.1} parent=11 // pred_fallthru
        _
      // Predicated region
      $region25: #{tpu_custom_call.1} parent=11 // pred_check
        %p215 = pneg %p123
      $region26: #{tpu_custom_call.1} parent=11 // pred_check_branch
        %217 = sbr.rel (%p215) target = $region28
      $region27: #{tpu_custom_call.1} parent=11 // pred_region
        _
      $region28: #{tpu_custom_call.1} parent=11 // pred_fallthru
        _
      // Predicated region
      $region29: #{tpu_custom_call.1} parent=11 // pred_check
        %p218 = pneg %p144
      $region30: #{tpu_custom_call.1} parent=11 // pred_check_branch
        %220 = sbr.rel (%p218) target = $region32
      $region31: #{tpu_custom_call.1} parent=11 // pred_region
        _
      $region32: #{tpu_custom_call.1} parent=11 // pred_fallthru
        _
      // Predicated region
      $region33: #{tpu_custom_call.1} parent=11 // pred_check
        %p221 = pneg %p165
      $region34: #{tpu_custom_call.1} parent=11 // pred_check_branch
        %223 = sbr.rel (%p221) target = $region36
      $region35: #{tpu_custom_call.1} parent=11 // pred_region
        _
      $region36: #{tpu_custom_call.1} parent=11 // pred_fallthru
        _
    $region12: #{tpu_custom_call.1} parent=5 // pred_fallthru
      _
    %p224 = scmp.lt.s32.totalorder %s13, 2
    // Predicated region
    $region37: #{tpu_custom_call.1} parent=5 // pred_check
      %p225 = pneg %p224
    $region38: #{tpu_custom_call.1} parent=5 // pred_check_branch
      %227 = sbr.rel (%p225) target = $region40
    $region39: #{tpu_custom_call.1} parent=5 // pred_region
      // Predicated region
      $region41: #{tpu_custom_call.1} parent=39 // pred_check
        %p228 = pneg %p33
      $region42: #{tpu_custom_call.1} parent=39 // pred_check_branch
        %230 = sbr.rel (%p228) target = $region44
      $region43: #{tpu_custom_call.1} parent=39 // pred_region
        %s231 = smul.u32 4, %s13
        %p232 = scmp.lt.s32.totalorder %s231, 7
        %s233 = scalar_select %p232, %s231, 7
        %s234 = smul.addr %s233, 8
        %s235 = scalar_lea.vmem %s0, %s234
        %s236 = smul.u32 4, %s13
      $region44: #{tpu_custom_call.1} parent=39 // pred_fallthru
        _
    $region40: #{tpu_custom_call.1} parent=5 // pred_fallthru
      _
    %p237 = scmp.le.s32.totalorder 1, %s13
    %p238 = scmp.lt.s32.totalorder %s13, 3
    %p239 = pnand %p237, %p238
    %p240 = pneg %p239
    // Predicated region
    $region45: #{tpu_custom_call.1} parent=5 // pred_check
      _
    $region46: #{tpu_custom_call.1} parent=5 // pred_check_branch
      %242 = sbr.rel (%p239) target = $region48
    $region47: #{tpu_custom_call.1} parent=5 // pred_region
      %s243 = ssub.s32 %s13, 1
      %s244 = smul.u32 4, %s18
      %p245 = scmp.lt.s32.totalorder %s244, 7
      %s246 = scalar_select %p245, %s244, 7
      %s247 = smul.addr %s246, 8
      %s248 = scalar_lea.vmem %s0, %s247
      %p249 = pneg %p39
      %p250 = pneg %p36
      %p251 = pneg %p60
      %p252 = pneg %p57
      %p253 = pneg %p81
      %p254 = pneg %p78
      %p255 = pneg %p102
      %p256 = pneg %p99
      %p257 = pneg %p123
      %p258 = pneg %p120
      %p259 = pneg %p144
      %p260 = pneg %p141
      %p261 = pneg %p165
      %p262 = pneg %p162
      %p263 = pneg %p191
      %p264 = pneg %p188
      %s265 = smul.u32 4, %s18
      %p266 = scmp.lt.s32.totalorder %s265, 7
      %s267 = scalar_select %p266, %s265, 7
      %s268 = smul.addr %s267, 8
      %s269 = scalar_lea.vmem %s7, %s268
      %s270 = smul.u32 4, %s18
      %p271 = scmp.lt.s32.totalorder %s270, 7
      %s272 = scalar_select %p271, %s270, 7
      %s273 = smul.addr %s272, 8
      %s274 = scalar_lea.vmem %s0, %s273
      %s275 = smul.u32 4, %s18
      %s276 = smul.u32 4, %s18
      %p277 = scmp.lt.s32.totalorder %s276, 7
      %s278 = scalar_select %p277, %s276, 7
      %s279 = smul.addr %s278, 8
      %s280 = scalar_lea.vmem %s7, %s279
      %s281 = smul.u32 4, %s18
      %v282 = vld [vmem:[%s274] sm:$0xff]
      %v283 = vld [vmem:[%s274 + $0x8] sm:$0xff]
      %v284 = vld [vmem:[%s274 + $0x10] sm:$0xff]
      %v285 = vld [vmem:[%s274 + $0x18] sm:$0xff]
      %v286 = vld [vmem:[%s1] sm:$0xff]
      %v287 = vld [vmem:[%s1 + $0x8] sm:$0xff]
      %v288 = vld [vmem:[%s1 + $0x10] sm:$0xff]
      %v289 = vld [vmem:[%s1 + $0x18] sm:$0xff]
      %v290 = vld [vmem:[%s2] sm:$0x1]
      %v292 = vlaneseq
      %v293 = vshrl.u32 %v292, 7
      %v294 = vsub.s32 0, %v293
      %v295 = vrot.slane %v290, %v294
      %vm297 = vcmask 261120
      %v299 = vsel %vm297, %v282, 0
      %v302 = vsel %vm297, %v283, 0
      %v305 = vsel %vm297, %v284, 0
      %v308 = vsel %vm297, %v285, 0
      %310 = vmatprep.subr.mxu0 0.0
      %311 = vmatpush1.msra.mxu0 0.0
      %312 = vmatprep.subr.mxu0 0.0
      %313 = vmatpush1.msra.mxu0 0.0
      %314 = vmatprep.subr.mxu0 0.0
      %315 = vmatpush1.msra.mxu0 0.0
      %316 = vmatprep.subr.mxu0 0.0
      %317 = vmatpush1.msra.mxu0 0.0
      %318 = vmatprep.subr.mxu0 0.0
      %319 = vmatpush1.msra.mxu0 0.0
      %320 = vmatprep.subr.mxu0 0.0
      %321 = vmatpush1.msra.mxu0 0.0
      %322 = vmatprep.subr.mxu0 0.0
      %323 = vmatpush1.msra.mxu0 0.0
      %324 = vmatprep.subr.mxu0 0.0
      %325 = vmatpush1.msra.mxu0 0.0
      %326 = vmatprep.subr.mxu0 0.0
      %327 = vmatpush1.msra.mxu0 0.0
      %328 = vmatprep.subr.mxu0 0.0
      %329 = vmatpush1.msra.mxu0 0.0
      %330 = vmatprep.subr.mxu0 0.0
      %331 = vmatpush1.msra.mxu0 0.0
      %332 = vmatprep.subr.mxu0 0.0
      %333 = vmatpush1.msra.mxu0 0.0
      %334 = vmatprep.subr.mxu0 0.0
      %335 = vmatpush1.msra.mxu0 %v289
      %336 = vmatprep.subr.mxu0 0.0
      %337 = vmatpush1.msra.mxu0 %v288
      %338 = vmatprep.subr.mxu0 0.0
      %339 = vmatpush1.msra.mxu0 %v287
      %340 = vmatprep.subr.mxu0 0.0
      %341 = vmatpush1.msra.mxu0 %v286
      %342 = vmatprep.subr.mxu0 0.0
      %343 = vmatpush2.msra.mxu0 0.0
      %344 = vmatprep.subr.mxu0 0.0
      %345 = vmatpush2.msra.mxu0 0.0
      %346 = vmatprep.subr.mxu0 0.0
      %347 = vmatpush2.msra.mxu0 0.0
      %348 = vmatprep.subr.mxu0 0.0
      %349 = vmatpush2.msra.mxu0 0.0
      %350 = vmatprep.subr.mxu0 0.0
      %351 = vmatpush2.msra.mxu0 0.0
      %352 = vmatprep.subr.mxu0 0.0
      %353 = vmatpush2.msra.mxu0 0.0
      %354 = vmatprep.subr.mxu0 0.0
      %355 = vmatpush2.msra.mxu0 0.0
      %356 = vmatprep.subr.mxu0 0.0
      %357 = vmatpush2.msra.mxu0 0.0
      %358 = vmatprep.subr.mxu0 0.0
      %359 = vmatpush2.msra.mxu0 0.0
      %360 = vmatprep.subr.mxu0 0.0
      %361 = vmatpush2.msra.mxu0 0.0
      %362 = vmatprep.subr.mxu0 0.0
      %363 = vmatpush2.msra.mxu0 0.0
      %364 = vmatprep.subr.mxu0 0.0
      %365 = vmatpush2.msra.mxu0 0.0
      %366 = vmatprep.subr.mxu0 0.0
      %367 = vmatpush2.msra.mxu0 0.0
      %368 = vmatprep.subr.mxu0 0.0
      %369 = vmatpush2.msra.mxu0 0.0
      %370 = vmatprep.subr.mxu0 0.0
      %371 = vmatpush2.msra.mxu0 0.0
      %372 = vmatprep.subr.mxu0 0.0
      %373 = vmatpush2.msra.mxu0 0.0
      %374 = vmatprep.mubr.f32.mxu0 0.0
      %375 = vmatmul.mubr.f32.gmra.mxu0 %v299
      %v376 = vpop.f32.mrf.mxu0
      %v377 = vadd.f32 %v295, %v376
      %v378 = vpop.f32.mrf.mxu0
      %379 = vmatprep.mubr.f32.mxu0 0.0
      %380 = vmatmul.mubr.f32.gmra.mxu0 %v302
      %v381 = vpop.f32.mrf.mxu0
      %v382 = vadd.f32 %v295, %v381
      %v383 = vpop.f32.mrf.mxu0
      %384 = vmatprep.mubr.f32.mxu0 0.0
      %385 = vmatmul.mubr.f32.gmra.mxu0 %v305
      %v386 = vpop.f32.mrf.mxu0
      %v387 = vadd.f32 %v295, %v386
      %v388 = vpop.f32.mrf.mxu0
      %389 = vmatprep.mubr.f32.mxu0 0.0
      %390 = vmatmul.mubr.f32.gmra.mxu0 %v308
      %v391 = vpop.f32.mrf.mxu0
      %v392 = vadd.f32 %v295, %v391
      %v393 = vpop.f32.mrf.mxu0
      %394 = vdwg.mxu0
      %v395 = vmax.f32 %v377, 0.0
      %v396 = vmax.f32 %v382, 0.0
      %v397 = vmax.f32 %v387, 0.0
      %v398 = vmax.f32 %v392, 0.0
      %v399 = vld [vmem:[%s3] sm:$0xff]
      %v400 = vld [vmem:[%s3 + $0x8] sm:$0xff]
      %v401 = vld [vmem:[%s3 + $0x10] sm:$0xff]
      %v402 = vld [vmem:[%s3 + $0x18] sm:$0xff]
      %v403 = vld [vmem:[%s4] sm:$0x1]
      %v405 = vlaneseq
      %v406 = vshrl.u32 %v405, 7
      %v407 = vsub.s32 0, %v406
      %v408 = vrot.slane %v403, %v407
      %v411 = vsel %vm297, %v395, 0
      %v414 = vsel %vm297, %v396, 0
      %v417 = vsel %vm297, %v397, 0
      %v420 = vsel %vm297, %v398, 0
      %422 = vmatprep.subr.mxu0 0.0
      %423 = vmatpush1.msra.mxu0 0.0
      %424 = vmatprep.subr.mxu0 0.0
      %425 = vmatpush1.msra.mxu0 0.0
      %426 = vmatprep.subr.mxu0 0.0
      %427 = vmatpush1.msra.mxu0 0.0
      %428 = vmatprep.subr.mxu0 0.0
      %429 = vmatpush1.msra.mxu0 0.0
      %430 = vmatprep.subr.mxu0 0.0
      %431 = vmatpush1.msra.mxu0 0.0
      %432 = vmatprep.subr.mxu0 0.0
      %433 = vmatpush1.msra.mxu0 0.0
      %434 = vmatprep.subr.mxu0 0.0
      %435 = vmatpush1.msra.mxu0 0.0
      %436 = vmatprep.subr.mxu0 0.0
      %437 = vmatpush1.msra.mxu0 0.0
      %438 = vmatprep.subr.mxu0 0.0
      %439 = vmatpush1.msra.mxu0 0.0
      %440 = vmatprep.subr.mxu0 0.0
      %441 = vmatpush1.msra.mxu0 0.0
      %442 = vmatprep.subr.mxu0 0.0
      %443 = vmatpush1.msra.mxu0 0.0
      %444 = vmatprep.subr.mxu0 0.0
      %445 = vmatpush1.msra.mxu0 0.0
      %446 = vmatprep.subr.mxu0 0.0
      %447 = vmatpush1.msra.mxu0 %v402
      %448 = vmatprep.subr.mxu0 0.0
      %449 = vmatpush1.msra.mxu0 %v401
      %450 = vmatprep.subr.mxu0 0.0
      %451 = vmatpush1.msra.mxu0 %v400
      %452 = vmatprep.subr.mxu0 0.0
      %453 = vmatpush1.msra.mxu0 %v399
      %454 = vmatprep.subr.mxu0 0.0
      %455 = vmatpush2.msra.mxu0 0.0
      %456 = vmatprep.subr.mxu0 0.0
      %457 = vmatpush2.msra.mxu0 0.0
      %458 = vmatprep.subr.mxu0 0.0
      %459 = vmatpush2.msra.mxu0 0.0
      %460 = vmatprep.subr.mxu0 0.0
      %461 = vmatpush2.msra.mxu0 0.0
      %462 = vmatprep.subr.mxu0 0.0
      %463 = vmatpush2.msra.mxu0 0.0
      %464 = vmatprep.subr.mxu0 0.0
      %465 = vmatpush2.msra.mxu0 0.0
      %466 = vmatprep.subr.mxu0 0.0
      %467 = vmatpush2.msra.mxu0 0.0
      %468 = vmatprep.subr.mxu0 0.0
      %469 = vmatpush2.msra.mxu0 0.0
      %470 = vmatprep.subr.mxu0 0.0
      %471 = vmatpush2.msra.mxu0 0.0
      %472 = vmatprep.subr.mxu0 0.0
      %473 = vmatpush2.msra.mxu0 0.0
      %474 = vmatprep.subr.mxu0 0.0
      %475 = vmatpush2.msra.mxu0 0.0
      %476 = vmatprep.subr.mxu0 0.0
      %477 = vmatpush2.msra.mxu0 0.0
      %478 = vmatprep.subr.mxu0 0.0
      %479 = vmatpush2.msra.mxu0 0.0
      %480 = vmatprep.subr.mxu0 0.0
      %481 = vmatpush2.msra.mxu0 0.0
      %482 = vmatprep.subr.mxu0 0.0
      %483 = vmatpush2.msra.mxu0 0.0
      %484 = vmatprep.subr.mxu0 0.0
      %485 = vmatpush2.msra.mxu0 0.0
      %486 = vmatprep.mubr.f32.mxu0 0.0
      %487 = vmatmul.mubr.f32.gmra.mxu0 %v411
      %v488 = vpop.f32.mrf.mxu0
      %v489 = vadd.f32 %v408, %v488
      %v490 = vpop.f32.mrf.mxu0
      %491 = vmatprep.mubr.f32.mxu0 0.0
      %492 = vmatmul.mubr.f32.gmra.mxu0 %v414
      %v493 = vpop.f32.mrf.mxu0
      %v494 = vadd.f32 %v408, %v493
      %v495 = vpop.f32.mrf.mxu0
      %496 = vmatprep.mubr.f32.mxu0 0.0
      %497 = vmatmul.mubr.f32.gmra.mxu0 %v417
      %v498 = vpop.f32.mrf.mxu0
      %v499 = vadd.f32 %v408, %v498
      %v500 = vpop.f32.mrf.mxu0
      %501 = vmatprep.mubr.f32.mxu0 0.0
      %502 = vmatmul.mubr.f32.gmra.mxu0 %v420
      %v503 = vpop.f32.mrf.mxu0
      %v504 = vadd.f32 %v408, %v503
      %v505 = vpop.f32.mrf.mxu0
      %506 = vdwg.mxu0
      %v507 = vmul.f32 %v489, %v489
      %v508 = vmul.f32 %v494, %v494
      %v509 = vmul.f32 %v499, %v499
      %v510 = vmul.f32 %v504, %v504
      %515 = vrot.lane.b32.xlu0 %v489, 16
      %v516 = vpop.permute.xlu0 %515
      %517 = vrot.lane.b32.xlu0 %v494, 16
      %v518 = vpop.permute.xlu0 %517
      %519 = vrot.lane.b32.xlu0 %v499, 16
      %v520 = vpop.permute.xlu0 %519
      %521 = vrot.lane.b32.xlu0 %v504, 16
      %v522 = vpop.permute.xlu0 %521
      %vm527 = vcmask 130048
      %v528 = vsel %vm527, %v507, %v516
      %v529 = vsel %vm527, %v508, %v518
      %v530 = vsel %vm527, %v509, %v520
      %v531 = vsel %vm527, %v510, %v522
      %v532 = vld [vmem:[%s5] sm:$0xff]
      %v533 = vld [vmem:[%s5 + $0x8] sm:$0xff]
      %v534 = vld [vmem:[%s5 + $0x10] sm:$0xff]
      %v535 = vld [vmem:[%s5 + $0x18] sm:$0xff]
      %v536 = vld [vmem:[%s6] sm:$0x1]
      %v538 = vlaneseq
      %v539 = vshrl.u32 %v538, 7
      %v540 = vsub.s32 0, %v539
      %v541 = vrot.slane %v536, %v540
      %v544 = vsel %vm297, %v528, 0
      %v547 = vsel %vm297, %v529, 0
      %v550 = vsel %vm297, %v530, 0
      %v553 = vsel %vm297, %v531, 0
      %555 = vmatprep.subr.mxu0 0.0
      %556 = vmatpush1.msra.mxu0 0.0
      %557 = vmatprep.subr.mxu0 0.0
      %558 = vmatpush1.msra.mxu0 0.0
      %559 = vmatprep.subr.mxu0 0.0
      %560 = vmatpush1.msra.mxu0 0.0
      %561 = vmatprep.subr.mxu0 0.0
      %562 = vmatpush1.msra.mxu0 0.0
      %563 = vmatprep.subr.mxu0 0.0
      %564 = vmatpush1.msra.mxu0 0.0
      %565 = vmatprep.subr.mxu0 0.0
      %566 = vmatpush1.msra.mxu0 0.0
      %567 = vmatprep.subr.mxu0 0.0
      %568 = vmatpush1.msra.mxu0 0.0
      %569 = vmatprep.subr.mxu0 0.0
      %570 = vmatpush1.msra.mxu0 0.0
      %571 = vmatprep.subr.mxu0 0.0
      %572 = vmatpush1.msra.mxu0 0.0
      %573 = vmatprep.subr.mxu0 0.0
      %574 = vmatpush1.msra.mxu0 0.0
      %575 = vmatprep.subr.mxu0 0.0
      %576 = vmatpush1.msra.mxu0 0.0
      %577 = vmatprep.subr.mxu0 0.0
      %578 = vmatpush1.msra.mxu0 0.0
      %579 = vmatprep.subr.mxu0 0.0
      %580 = vmatpush1.msra.mxu0 %v535
      %581 = vmatprep.subr.mxu0 0.0
      %582 = vmatpush1.msra.mxu0 %v534
      %583 = vmatprep.subr.mxu0 0.0
      %584 = vmatpush1.msra.mxu0 %v533
      %585 = vmatprep.subr.mxu0 0.0
      %586 = vmatpush1.msra.mxu0 %v532
      %587 = vmatprep.subr.mxu0 0.0
      %588 = vmatpush2.msra.mxu0 0.0
      %589 = vmatprep.subr.mxu0 0.0
      %590 = vmatpush2.msra.mxu0 0.0
      %591 = vmatprep.subr.mxu0 0.0
      %592 = vmatpush2.msra.mxu0 0.0
      %593 = vmatprep.subr.mxu0 0.0
      %594 = vmatpush2.msra.mxu0 0.0
      %595 = vmatprep.subr.mxu0 0.0
      %596 = vmatpush2.msra.mxu0 0.0
      %597 = vmatprep.subr.mxu0 0.0
      %598 = vmatpush2.msra.mxu0 0.0
      %599 = vmatprep.subr.mxu0 0.0
      %600 = vmatpush2.msra.mxu0 0.0
      %601 = vmatprep.subr.mxu0 0.0
      %602 = vmatpush2.msra.mxu0 0.0
      %603 = vmatprep.subr.mxu0 0.0
      %604 = vmatpush2.msra.mxu0 0.0
      %605 = vmatprep.subr.mxu0 0.0
      %606 = vmatpush2.msra.mxu0 0.0
      %607 = vmatprep.subr.mxu0 0.0
      %608 = vmatpush2.msra.mxu0 0.0
      %609 = vmatprep.subr.mxu0 0.0
      %610 = vmatpush2.msra.mxu0 0.0
      %611 = vmatprep.subr.mxu0 0.0
      %612 = vmatpush2.msra.mxu0 0.0
      %613 = vmatprep.subr.mxu0 0.0
      %614 = vmatpush2.msra.mxu0 0.0
      %615 = vmatprep.subr.mxu0 0.0
      %616 = vmatpush2.msra.mxu0 0.0
      %617 = vmatprep.subr.mxu0 0.0
      %618 = vmatpush2.msra.mxu0 0.0
      %619 = vmatprep.mubr.f32.mxu0 0.0
      %620 = vmatmul.mubr.f32.gmra.mxu0 %v544
      %v621 = vpop.f32.mrf.mxu0
      %v622 = vadd.f32 %v541, %v621
      %v623 = vpop.f32.mrf.mxu0
      %624 = vmatprep.mubr.f32.mxu0 0.0
      %625 = vmatmul.mubr.f32.gmra.mxu0 %v547
      %v626 = vpop.f32.mrf.mxu0
      %v627 = vadd.f32 %v541, %v626
      %v628 = vpop.f32.mrf.mxu0
      %629 = vmatprep.mubr.f32.mxu0 0.0
      %630 = vmatmul.mubr.f32.gmra.mxu0 %v550
      %v631 = vpop.f32.mrf.mxu0
      %v632 = vadd.f32 %v541, %v631
      %v633 = vpop.f32.mrf.mxu0
      %634 = vmatprep.mubr.f32.mxu0 0.0
      %635 = vmatmul.mubr.f32.gmra.mxu0 %v553
      %v636 = vpop.f32.mrf.mxu0
      %v637 = vadd.f32 %v541, %v636
      %v638 = vpop.f32.mrf.mxu0
      %639 = vdwg.mxu0
      %vm640 = vcmask 97280
      %641 = vst.msk [vmem:[%s280] sm:$0xff] %vm640, %v622
      %642 = vst.msk [vmem:[%s280 + $0x8] sm:$0xff] %vm640, %v627
      %643 = vst.msk [vmem:[%s280 + $0x10] sm:$0xff] %vm640, %v632
      %644 = vst.msk [vmem:[%s280 + $0x18] sm:$0xff] %vm640, %v637
      %s645 = smul.u32 4, %s18
      %p646 = scmp.lt.s32.totalorder %s645, 7
      %s647 = scalar_select %p646, %s645, 7
      %s648 = smul.addr %s647, 8
      %s649 = scalar_lea.vmem %s7, %s648
      // Predicated region
      $region49: #{tpu_custom_call.1} parent=47 // pred_check
        %p650 = pneg %p188
      $region50: #{tpu_custom_call.1} parent=47 // pred_check_branch
        %652 = sbr.rel (%p650) target = $region52
      $region51: #{tpu_custom_call.1} parent=47 // pred_region
        %s653 = smul.u32 4, %s18
      $region52: #{tpu_custom_call.1} parent=47 // pred_fallthru
        _
    $region48: #{tpu_custom_call.1} parent=5 // pred_fallthru
      _
    %p654 = scmp.le.s32.totalorder 2, %s13
    // Predicated region
    $region53: #{tpu_custom_call.1} parent=5 // pred_check
      %p655 = pneg %p654
    $region54: #{tpu_custom_call.1} parent=5 // pred_check_branch
      %657 = sbr.rel (%p655) target = $region56
    $region55: #{tpu_custom_call.1} parent=5 // pred_region
      %s658 = ssub.s32 %s13, 2
      // Predicated region
      $region57: #{tpu_custom_call.1} parent=55 // pred_check
        %p659 = pneg %p194
      $region58: #{tpu_custom_call.1} parent=55 // pred_check_branch
        %661 = sbr.rel (%p659) target = $region60
      $region59: #{tpu_custom_call.1} parent=55 // pred_region
        %s662 = smul.u32 4, %s19
        %p663 = scmp.lt.s32.totalorder %s662, 7
        %s664 = scalar_select %p663, %s662, 7
        %s665 = smul.addr %s664, 8
        %s666 = scalar_lea.vmem %s7, %s665
      $region60: #{tpu_custom_call.1} parent=55 // pred_fallthru
        _
    $region56: #{tpu_custom_call.1} parent=5 // pred_fallthru
      _
  $region6: #{tpu_custom_call.1} parent=0 // loop_footer
    %s17 = sadd.s32 1, %s13
  $region7: #{tpu_custom_call.1} parent=0 // loop_footer_branch
    %12 = sbr.rel target = $region3
  $region8: #{tpu_custom_call.1} parent=0 // loop_exit
    _

</llo_original>
